<compile_context>
chip_gen: v6e
topology: v6e:2x2x1
jax: 0.10.0
libtpu: 0.0.40
codegen_flags: <defaults>
</compile_context>

<pallas_src>
import math

import jax
import jax.numpy as jnp
from jax.experimental import pallas as pl
from jax.experimental.pallas import tpu as pltpu


def _is_pow2(n: int) -> bool:
    return n > 0 and (n & (n - 1)) == 0


def _padded_tile_bytes(rows: int, cols: int, itemsize: int) -> int:
    """VMEM footprint of a (rows, cols) tile after (8, 128) layout padding."""
    return ((rows + 7) // 8) * 8 * ((cols + 127) // 128) * 128 * itemsize


def _tpu_vmem_budget():
    """Returns (tile_budget_bytes, vmem_limit_bytes_or_None, has_two_tensorcores)."""
    kind = ""
    try:
        kind = jax.devices()[0].device_kind.lower()
    except Exception:
        pass
    if "v7" in kind or "7x" in kind:
        # v7x: 64 MiB physical VMEM per TensorCore, 2 TCs per chip.
        return 28 * 2**20, 40 * 2**20, True
    if "v5" in kind or "v6" in kind:
        # v5e/v5p/v6e: 128 MiB physical VMEM, single TC.
        return 56 * 2**20, 80 * 2**20, False
    # Unknown device: stay conservative, keep the compiler's default limit.
    return 12 * 2**20, None, False


def _make_packed_sdp_kernel(scale: float, num_pack: int, packed_k: int, mm_dtype):
    """Kernel factory closing over static config (scale folded as an immediate).

    Per grid step the refs hold a batch of super-heads:
      q_ref   (TB, C,   G*W)   lane-packed queries           (mm_dtype)
      kbd_ref (TB, G*W, G*K)   block-diagonal K^T             (mm_dtype)
      vbd_ref (TB, G*K, G*D)   block-diagonal V               (mm_dtype)
      o_ref   (TB, C,   G*D)   lane-dense output slab
    Score column order is interleaved: head = column % G.
    """

    def kernel(q_ref, kbd_ref, vbd_ref, o_ref):
        q = q_ref[...]
        kbd = kbd_ref[...]
        vbd = vbd_ref[...]

        # scores: one dense MXU push per super-head (keys already transposed
        # and block-diagonal in the wrapper -> no in-kernel transpose).
        s = jnp.einsum('bcw,bwk->bck', q, kbd,
                       preferred_element_type=jnp.float32)
        s = s * scale                                   # f32, VPU

        if num_pack == 1:
            # Unpacked fallback path (D >= 128, non-power-of-two K, ...).
            m = jnp.max(s, axis=-1, keepdims=True)
            p = jnp.exp(s - m)
            den = jnp.sum(p, axis=-1, keepdims=True)
        else:
            # Exact per-head max/sum on the interleaved lane layout
            # (head = lane % G): log2(K) cyclic rolls by multiples of G stay
            # within a head's lanes and leave the result already broadcast.
            m = s
            shift = packed_k // 2
            while shift >= num_pack:
                m = jnp.maximum(m, pltpu.roll(m, shift=shift, axis=2))
                shift //= 2
            p = jnp.exp(s - m)
            den = p
            shift = packed_k // 2
            while shift >= num_pack:
                den = den + pltpu.roll(den, shift=shift, axis=2)
                shift //= 2

        # Exact reciprocal (EUP); approx=True traded accuracy for nothing here.
        p = (p * pl.reciprocal(den, approx=False)).astype(mm_dtype)

        # Second matmul: block-diagonal V produces the lane-dense (C, G*D)
        # slab directly — no lane concatenation.
        out = jnp.einsum('bck,bkd->bcd', p, vbd,
                         preferred_element_type=jnp.float32)
        o_ref[...] = out.astype(o_ref.dtype)

    return kernel


def scale_dot_product(x1, x2, x3, scale, *,
                      target_heads_per_block: int = 128,
                      matmul_dtype=jnp.bfloat16):
    """Pallas TPU implementation of ScaleDotProduct.forward.

    x1: (B, H, C, W) queries, x2: (B, H, K, W) keys, x3: (B, H, K, D) values.
    scale must be a static Python/NumPy scalar (folded into the kernel); a
    traced scale would need an SMEM scalar operand instead.
    Returns (B, H, C, D).
    """
    B, H, C, W = x1.shape
    B2, H2, K, W2 = x2.shape
    B3, H3, K2, D = x3.shape
    assert (B, H) == (B2, H2) == (B3, H3) and W == W2 and K == K2
    scale = float(scale)

    out_dtype = x1.dtype
    mm_dtype = jnp.dtype(x1.dtype) if matmul_dtype is None else jnp.dtype(matmul_dtype)
    mm_isz = mm_dtype.itemsize
    out_isz = jnp.dtype(out_dtype).itemsize
    BH = B * H

    # ---- head-packing factor G (lane-dense output needs G*D == 128) --------
    G = 1
    if D < 128 and 128 % D == 0 and _is_pow2(K):
        G = 128 // D
        # keep packed operands reasonably sized (block-diag inflates K/V by G).
        while G > 1 and (G * K > 512 or G * W > 512):
            G //= 2
    GW, GK, GD = G * W, G * K, G * D

    n_super = pl.cdiv(BH, G)            # super-heads (BH padded to multiple of G)

    # ---- generation-aware head-batch sizing (per-step VMEM from padded bytes)
    tile_budget, vmem_limit, two_tc = _tpu_vmem_budget()
    per_super = 2 * (_padded_tile_bytes(C, GW, mm_isz)       # double-buffered ins/out
                     + _padded_tile_bytes(GW, GK, mm_isz)
                     + _padded_tile_bytes(GK, GD, mm_isz)
                     + _padded_tile_bytes(C, GD, out_isz))
    per_super += 4 * _padded_tile_bytes(C, GK, 4)             # f32 softmax temporaries
    tbg_vmem = max(1, tile_budget // per_super)
    tbg_target = max(1, pl.cdiv(target_heads_per_block, G))
    tbg = max(1, min(n_super, tbg_target, tbg_vmem))
    steps = pl.cdiv(n_super, tbg)
    if two_tc and n_super > 1:
        # v7x: keep an even number (>= 2) of grid steps so the "parallel"
        # axis splits cleanly across the two TensorCores.
        if steps == 1:
            steps = 2
        elif steps % 2:
            steps += 1
        tbg = pl.cdiv(n_super, steps)
    n_super_pad = steps * tbg
    BH_pad = n_super_pad * G            # pad heads instead of collapsing the block
    pad = BH_pad - BH

    # ---- wrapper-side packing (pure layout plumbing / XLA ops) -------------
    def _prep(x):
        x = x.reshape(BH, *x.shape[2:]).astype(mm_dtype)
        if pad:
            x = jnp.pad(x, ((0, pad),) + ((0, 0),) * (x.ndim - 1))
        return x

    x1f = _prep(x1).reshape(n_super_pad, G, C, W)
    x2f = _prep(x2).reshape(n_super_pad, G, K, W)
    x3f = _prep(x3).reshape(n_super_pad, G, K, D)

    eye = jnp.eye(G, dtype=mm_dtype)
    # Q packed on lanes:      q_p[s, c, g*W + w]            = x1[s, g, c, w]
    q_p = jnp.transpose(x1f, (0, 2, 1, 3)).reshape(n_super_pad, C, GW)
    # K^T block-diagonal:     k_bd[s, g*W + w, k*G + h]     = (g==h) * x2[s, g, k, w]
    k_bd = jnp.einsum('sgkw,gh->sgwkh', x2f, eye).reshape(n_super_pad, GW, GK)
    # V block-diagonal:       v_bd[s, k*G + h, g*D + d]     = (g==h) * x3[s, g, k, d]
    v_bd = jnp.einsum('sgkd,gh->skhgd', x3f, eye).reshape(n_super_pad, GK, GD)

    kernel = _make_packed_sdp_kernel(scale, G, GK, mm_dtype)

    out_packed = pl.pallas_call(
        kernel,
        out_shape=jax.ShapeDtypeStruct((n_super_pad, C, GD), out_dtype),
        grid=(steps,),
        in_specs=[
            pl.BlockSpec((tbg, C, GW), lambda i: (i, 0, 0)),
            pl.BlockSpec((tbg, GW, GK), lambda i: (i, 0, 0)),
            pl.BlockSpec((tbg, GK, GD), lambda i: (i, 0, 0)),
        ],
        out_specs=pl.BlockSpec((tbg, C, GD), lambda i: (i, 0, 0)),
        compiler_params=pltpu.CompilerParams(
            dimension_semantics=("parallel",),
            vmem_limit_bytes=vmem_limit,
        ),
    )(q_p, k_bd, v_bd)

    # ---- undo the lane packing (wrapper-side layout plumbing) --------------
    out = out_packed.reshape(n_super_pad, C, G, D)
    out = jnp.moveaxis(out, 2, 1).reshape(BH_pad, C, D)
    return out[:BH].reshape(B, H, C, D)


def _reference(x1, x2, x3, scale, *, operand_dtype=jnp.float32):
    """Pure-XLA mirror of ScaleDotProduct.forward (optionally bf16 operands)."""
    q = x1.astype(operand_dtype)
    k = x2.astype(operand_dtype)
    v = x3.astype(operand_dtype)
    s = jnp.einsum('bhcw,bhkw->bhck', q, k,
                   preferred_element_type=jnp.float32,
                   precision=jax.lax.Precision.HIGHEST) * scale
    att = jax.nn.softmax(s, axis=-1).astype(operand_dtype)
    return jnp.einsum('bhck,bhkd->bhcd', att, v,
                      preferred_element_type=jnp.float32,
                      precision=jax.lax.Precision.HIGHEST)


if __name__ == "__main__":
    key = jax.random.PRNGKey(0)
    k1, k2, k3 = jax.random.split(key, 3)

    B, H, C, K, W, D = 2, 4, 16, 16, 32, 32
    x1 = jax.random.normal(k1, (B, H, C, W), dtype=jnp.float32)
    x2 = jax.random.normal(k2, (B, H, K, W), dtype=jnp.float32)
    x3 = jax.random.normal(k3, (B, H, K, D), dtype=jnp.float32)
    scale = 1.0 / math.sqrt(W)

    sdp = jax.jit(scale_dot_product, static_argnums=(3,),
                  static_argnames=("matmul_dtype",))

    # Default path: bf16 matmul operands, f32 softmax/accumulation.
    out_bf16 = jax.block_until_ready(sdp(x1, x2, x3, scale))
    # Exact-semantics path: f32 operands end to end (tight correctness gate).
    out_f32 = jax.block_until_ready(sdp(x1, x2, x3, scale,
                                        matmul_dtype=jnp.float32))
    assert out_bf16.shape == (B, H, C, D) and out_f32.shape == (B, H, C, D)

    ref = _reference(x1, x2, x3, scale)
    # f32-operand kernel must match the f32 PyTorch-equivalent reference tightly.
    assert jnp.allclose(out_f32, ref, atol=1e-3, rtol=1e-3), float(
        jnp.max(jnp.abs(out_f32 - ref)))
    # bf16-operand kernel: gap vs the f32 reference is the intended MXU operand
    # quantization (kept small by f32 softmax + f32 accumulation).
    assert jnp.allclose(out_bf16, ref, atol=7.5e-2, rtol=7.5e-2), float(
        jnp.max(jnp.abs(out_bf16 - ref)))

    print("KERNEL_OK")
</pallas_src>

<mosaic_0001>
module attributes {stable_mosaic.version = 11 : i64} {
  func.func @kernel(%arg0: i32, %arg1: memref<2x16x128xbf16, #tpu.memory_space<vmem>>, %arg2: memref<2x128x64xbf16, #tpu.memory_space<vmem>>, %arg3: memref<2x64x128xbf16, #tpu.memory_space<vmem>>, %arg4: memref<2x16x128xf32, #tpu.memory_space<vmem>>) attributes {dimension_semantics = [#tpu.dimension_semantics<parallel>], iteration_bounds = array<i64: 1>, scalar_prefetch = 0 : i64, scratch_operands = 0 : i64, tpu.core_type = #tpu.core_type<tc>, window_params = [{transform_indices = @transform_0, window_bounds = array<i64: 2, 16, 128>}, {transform_indices = @transform_1, window_bounds = array<i64: 2, 128, 64>}, {transform_indices = @transform_2, window_bounds = array<i64: 2, 64, 128>}, {transform_indices = @transform_3, window_bounds = array<i64: 2, 16, 128>}]} {
    %c0 = arith.constant 0 : index
    %c0_0 = arith.constant 0 : index
    %c0_1 = arith.constant 0 : index
    %0 = vector.load %arg1[%c0, %c0_0, %c0_1] : memref<2x16x128xbf16, #tpu.memory_space<vmem>>, vector<2x16x128xbf16>
    %c0_2 = arith.constant 0 : index
    %c0_3 = arith.constant 0 : index
    %c0_4 = arith.constant 0 : index
    %1 = vector.load %arg2[%c0_2, %c0_3, %c0_4] : memref<2x128x64xbf16, #tpu.memory_space<vmem>>, vector<2x128x64xbf16>
    %c0_5 = arith.constant 0 : index
    %c0_6 = arith.constant 0 : index
    %c0_7 = arith.constant 0 : index
    %2 = vector.load %arg3[%c0_5, %c0_6, %c0_7] : memref<2x64x128xbf16, #tpu.memory_space<vmem>>, vector<2x64x128xbf16>
    "tpu.trace_start"() <{level = 10 : i32, message = "bcw,bwk->bck"}> : () -> ()
    %cst = arith.constant dense<0.000000e+00> : vector<2x16x64xf32>
    %3 = tpu.matmul %0, %1, %cst {dimension_numbers = #tpu.dot_dimension_numbers<[2], [1], [1], [2], [0, 0, 0, 1, 1, 2], [0], [0]>} : vector<2x16x128xbf16>, vector<2x128x64xbf16>, vector<2x16x64xf32> -> vector<2x16x64xf32>
    "tpu.trace_stop"() : () -> ()
    %cst_8 = arith.constant 0.176776692 : f32
    %4 = vector.broadcast %cst_8 : f32 to vector<2x16x64xf32>
    %5 = arith.mulf %3, %4 : vector<2x16x64xf32>
    %c32_i32 = arith.constant 32 : i32
    %6 = tpu.dynamic_rotate %5 by %c32_i32 dim 2 : vector<2x16x64xf32>, i32 -> vector<2x16x64xf32>
    %7 = arith.maximumf %5, %6 : vector<2x16x64xf32>
    %c16_i32 = arith.constant 16 : i32
    %8 = tpu.dynamic_rotate %7 by %c16_i32 dim 2 : vector<2x16x64xf32>, i32 -> vector<2x16x64xf32>
    %9 = arith.maximumf %7, %8 : vector<2x16x64xf32>
    %c8_i32 = arith.constant 8 : i32
    %10 = tpu.dynamic_rotate %9 by %c8_i32 dim 2 : vector<2x16x64xf32>, i32 -> vector<2x16x64xf32>
    %11 = arith.maximumf %9, %10 : vector<2x16x64xf32>
    %c4_i32 = arith.constant 4 : i32
    %12 = tpu.dynamic_rotate %11 by %c4_i32 dim 2 : vector<2x16x64xf32>, i32 -> vector<2x16x64xf32>
    %13 = arith.maximumf %11, %12 : vector<2x16x64xf32>
    %14 = arith.subf %5, %13 : vector<2x16x64xf32>
    %15 = math.exp %14 : vector<2x16x64xf32>
    %c32_i32_9 = arith.constant 32 : i32
    %16 = tpu.dynamic_rotate %15 by %c32_i32_9 dim 2 : vector<2x16x64xf32>, i32 -> vector<2x16x64xf32>
    %17 = arith.addf %15, %16 : vector<2x16x64xf32>
    %c16_i32_10 = arith.constant 16 : i32
    %18 = tpu.dynamic_rotate %17 by %c16_i32_10 dim 2 : vector<2x16x64xf32>, i32 -> vector<2x16x64xf32>
    %19 = arith.addf %17, %18 : vector<2x16x64xf32>
    %c8_i32_11 = arith.constant 8 : i32
    %20 = tpu.dynamic_rotate %19 by %c8_i32_11 dim 2 : vector<2x16x64xf32>, i32 -> vector<2x16x64xf32>
    %21 = arith.addf %19, %20 : vector<2x16x64xf32>
    %c4_i32_12 = arith.constant 4 : i32
    %22 = tpu.dynamic_rotate %21 by %c4_i32_12 dim 2 : vector<2x16x64xf32>, i32 -> vector<2x16x64xf32>
    %23 = arith.addf %21, %22 : vector<2x16x64xf32>
    %24 = tpu.reciprocal %23 : vector<2x16x64xf32> -> vector<2x16x64xf32>
    %25 = arith.mulf %15, %24 : vector<2x16x64xf32>
    %26 = arith.truncf %25 : vector<2x16x64xf32> to vector<2x16x64xbf16>
    "tpu.trace_start"() <{level = 10 : i32, message = "bck,bkd->bcd"}> : () -> ()
    %cst_13 = arith.constant dense<0.000000e+00> : vector<2x16x128xf32>
    %27 = tpu.matmul %26, %2, %cst_13 {dimension_numbers = #tpu.dot_dimension_numbers<[2], [1], [1], [2], [0, 0, 0, 1, 1, 2], [0], [0]>} : vector<2x16x64xbf16>, vector<2x64x128xbf16>, vector<2x16x128xf32> -> vector<2x16x128xf32>
    "tpu.trace_stop"() : () -> ()
    %c0_14 = arith.constant 0 : index
    %c0_15 = arith.constant 0 : index
    %c0_16 = arith.constant 0 : index
    %28 = vector.load %arg4[%c0_14, %c0_15, %c0_16] : memref<2x16x128xf32, #tpu.memory_space<vmem>>, vector<2x16x128xf32>
    tpu.vector_store %arg4[%c0_14, %c0_15, %c0_16], %27 {strides = array<i32>} : memref<2x16x128xf32, #tpu.memory_space<vmem>>, vector<2x16x128xf32>,
    return
  }
  func.func @transform_0(%arg0: i32) -> (i32, i32, i32) {
    %c0_i32 = arith.constant 0 : i32
    %c0_i32_0 = arith.constant 0 : i32
    %c0_i32_1 = arith.constant 0 : i32
    return %arg0, %c0_i32, %c0_i32_0 : i32, i32, i32
  }
  func.func @transform_1(%arg0: i32) -> (i32, i32, i32) {
    %c0_i32 = arith.constant 0 : i32
    %c0_i32_0 = arith.constant 0 : i32
    %c0_i32_1 = arith.constant 0 : i32
    return %arg0, %c0_i32, %c0_i32_0 : i32, i32, i32
  }
  func.func @transform_2(%arg0: i32) -> (i32, i32, i32) {
    %c0_i32 = arith.constant 0 : i32
    %c0_i32_0 = arith.constant 0 : i32
    %c0_i32_1 = arith.constant 0 : i32
    return %arg0, %c0_i32, %c0_i32_0 : i32, i32, i32
  }
  func.func @transform_3(%arg0: i32) -> (i32, i32, i32) {
    %c0_i32 = arith.constant 0 : i32
    %c0_i32_0 = arith.constant 0 : i32
    %c0_i32_1 = arith.constant 0 : i32
    return %arg0, %c0_i32, %c0_i32_0 : i32, i32, i32
  }
}

</mosaic_0001>

<llo_original>
// kernel: scale_dot_product.1
$region0: #{scale_dot_product.1}
  #allocation0 [shape = 'u32[]', space=smem, size = 0x4, offset = 0x4, fixed_abs, tag = 'smem constant byte address 0x4 - core index']
  #allocation1 [shape = 'u32[144,128]{1,0:T(1,128)}', space=vmem, size = 0x12000, scoped, tag = 'internal scratch']
  %s0 = inlined_call_operand.vmem [shape: bf16[2,16,128], index: 0, kind: input, shape index: {}]
  %s1 = inlined_call_operand.vmem [shape: bf16[2,128,64], index: 1, kind: input, shape index: {}]
  %s2 = inlined_call_operand.vmem [shape: bf16[2,64,128], index: 2, kind: input, shape index: {}]
  %s3 = inlined_call_operand.vmem [shape: f32[2,16,128], index: 3, kind: output, shape index: {}]
  %s4 = sld [smem:[#allocation0]]
  $region22: #{scale_dot_product.1} parent=0
    _
  %s6 = ssub.s32 1, %s4
  %s7 = scalar_select 0, %s6, %s4
  // Predicated region
  $region2: #{scale_dot_product.1} parent=0 // pred_check
    _
  $region3: #{scale_dot_product.1} parent=0 // pred_check_branch
    %9 = sbr.rel (0) target = $region5
  $region4: #{scale_dot_product.1} parent=0 // pred_region
    _
  $region5: #{scale_dot_product.1} parent=0 // pred_fallthru
    _
  // Predicated region
  $region6: #{scale_dot_product.1} parent=0 // pred_check
    _
  $region7: #{scale_dot_product.1} parent=0 // pred_check_branch
    %11 = sbr.rel (0) target = $region9
  $region8: #{scale_dot_product.1} parent=0 // pred_region
    _
  $region9: #{scale_dot_product.1} parent=0 // pred_fallthru
    _
  // Predicated region
  $region10: #{scale_dot_product.1} parent=0 // pred_check
    _
  $region11: #{scale_dot_product.1} parent=0 // pred_check_branch
    %13 = sbr.rel (0) target = $region13
  $region12: #{scale_dot_product.1} parent=0 // pred_region
    _
  $region13: #{scale_dot_product.1} parent=0 // pred_fallthru
    _
  %v15 = vld [vmem:[%s0] sm:$0xf]
  %v16 = vld [vmem:[%s0 + $0x4] sm:$0xf]
  %v17 = vld [vmem:[%s0 + $0x8] sm:$0xf]
  %v18 = vld [vmem:[%s0 + $0xc] sm:$0xf]
  %v19 = vld [vmem:[%s1] sm:$0xf]
  %v20 = vld [vmem:[%s1 + $0x4] sm:$0xf]
  %v21 = vld [vmem:[%s1 + $0x8] sm:$0xf]
  %v22 = vld [vmem:[%s1 + $0xc] sm:$0xf]
  %v23 = vld [vmem:[%s1 + $0x10] sm:$0xf]
  %v24 = vld [vmem:[%s1 + $0x14] sm:$0xf]
  %v25 = vld [vmem:[%s1 + $0x18] sm:$0xf]
  %v26 = vld [vmem:[%s1 + $0x1c] sm:$0xf]
  %v27 = vld [vmem:[%s1 + $0x20] sm:$0xf]
  %v28 = vld [vmem:[%s1 + $0x24] sm:$0xf]
  %v29 = vld [vmem:[%s1 + $0x28] sm:$0xf]
  %v30 = vld [vmem:[%s1 + $0x2c] sm:$0xf]
  %v31 = vld [vmem:[%s1 + $0x30] sm:$0xf]
  %v32 = vld [vmem:[%s1 + $0x34] sm:$0xf]
  %v33 = vld [vmem:[%s1 + $0x38] sm:$0xf]
  %v34 = vld [vmem:[%s1 + $0x3c] sm:$0xf]
  %v35 = vld [vmem:[%s1 + $0x40] sm:$0xf]
  %v36 = vld [vmem:[%s1 + $0x44] sm:$0xf]
  %v37 = vld [vmem:[%s1 + $0x48] sm:$0xf]
  %v38 = vld [vmem:[%s1 + $0x4c] sm:$0xf]
  %v39 = vld [vmem:[%s1 + $0x50] sm:$0xf]
  %v40 = vld [vmem:[%s1 + $0x54] sm:$0xf]
  %v41 = vld [vmem:[%s1 + $0x58] sm:$0xf]
  %v42 = vld [vmem:[%s1 + $0x5c] sm:$0xf]
  %v43 = vld [vmem:[%s1 + $0x60] sm:$0xf]
  %v44 = vld [vmem:[%s1 + $0x64] sm:$0xf]
  %v45 = vld [vmem:[%s1 + $0x68] sm:$0xf]
  %v46 = vld [vmem:[%s1 + $0x6c] sm:$0xf]
  %v47 = vld [vmem:[%s1 + $0x70] sm:$0xf]
  %v48 = vld [vmem:[%s1 + $0x74] sm:$0xf]
  %v49 = vld [vmem:[%s1 + $0x78] sm:$0xf]
  %v50 = vld [vmem:[%s1 + $0x7c] sm:$0xf]
  %v51 = vld [vmem:[%s2] sm:$0xf]
  %v52 = vld [vmem:[%s2 + $0x4] sm:$0xf]
  %v53 = vld [vmem:[%s2 + $0x8] sm:$0xf]
  %v54 = vld [vmem:[%s2 + $0xc] sm:$0xf]
  %v55 = vld [vmem:[%s2 + $0x10] sm:$0xf]
  %v56 = vld [vmem:[%s2 + $0x14] sm:$0xf]
  %v57 = vld [vmem:[%s2 + $0x18] sm:$0xf]
  %v58 = vld [vmem:[%s2 + $0x1c] sm:$0xf]
  %v59 = vld [vmem:[%s2 + $0x20] sm:$0xf]
  %v60 = vld [vmem:[%s2 + $0x24] sm:$0xf]
  %v61 = vld [vmem:[%s2 + $0x28] sm:$0xf]
  %v62 = vld [vmem:[%s2 + $0x2c] sm:$0xf]
  %v63 = vld [vmem:[%s2 + $0x30] sm:$0xf]
  %v64 = vld [vmem:[%s2 + $0x34] sm:$0xf]
  %v65 = vld [vmem:[%s2 + $0x38] sm:$0xf]
  %v66 = vld [vmem:[%s2 + $0x3c] sm:$0xf]
  %v69 = vunpack.c.l.b16 %v15
  %v70 = vunpack.c.l.b16 %v16
  %v71 = vpack.c.b16 %v70, %v69
  %v89 = vunpack.c.l.b16 %v19
  %v90 = vunpack.c.l.b16 %v20
  %v91 = vunpack.c.l.b16 %v21
  %v92 = vunpack.c.l.b16 %v22
  %v93 = vunpack.c.l.b16 %v23
  %v94 = vunpack.c.l.b16 %v24
  %v95 = vunpack.c.l.b16 %v25
  %v96 = vunpack.c.l.b16 %v26
  %v97 = vunpack.c.l.b16 %v27
  %v98 = vunpack.c.l.b16 %v28
  %v99 = vunpack.c.l.b16 %v29
  %v100 = vunpack.c.l.b16 %v30
  %v101 = vunpack.c.l.b16 %v31
  %v102 = vunpack.c.l.b16 %v32
  %v103 = vunpack.c.l.b16 %v33
  %v104 = vunpack.c.l.b16 %v34
  %v105 = vpack.c.b16 %v90, %v89
  %v106 = vpack.c.b16 %v92, %v91
  %v107 = vpack.c.b16 %v94, %v93
  %v108 = vpack.c.b16 %v96, %v95
  %v109 = vpack.c.b16 %v98, %v97
  %v110 = vpack.c.b16 %v100, %v99
  %v111 = vpack.c.b16 %v102, %v101
  %v112 = vpack.c.b16 %v104, %v103
  %121 = vmatprep.subr.bf16.mxu0 0
  %122 = vmatpush1.bf16.msra.mxu0 %v112
  %123 = vmatprep.subr.bf16.mxu0 0
  %124 = vmatpush1.bf16.msra.mxu0 %v111
  %125 = vmatprep.subr.bf16.mxu0 0
  %126 = vmatpush1.bf16.msra.mxu0 %v110
  %127 = vmatprep.subr.bf16.mxu0 0
  %128 = vmatpush1.bf16.msra.mxu0 %v109
  %129 = vmatprep.subr.bf16.mxu0 0
  %130 = vmatpush1.bf16.msra.mxu0 %v108
  %131 = vmatprep.subr.bf16.mxu0 0
  %132 = vmatpush1.bf16.msra.mxu0 %v107
  %133 = vmatprep.subr.bf16.mxu0 0
  %134 = vmatpush1.bf16.msra.mxu0 %v106
  %135 = vmatprep.subr.bf16.mxu0 0
  %136 = vmatpush1.bf16.msra.mxu0 %v105
  %137 = vmatprep.subr.bf16.mxu0 0
  %138 = vmatpush2.bf16.msra.mxu0 0
  %139 = vmatprep.subr.bf16.mxu0 0
  %140 = vmatpush2.bf16.msra.mxu0 0
  %141 = vmatprep.subr.bf16.mxu0 0
  %142 = vmatpush2.bf16.msra.mxu0 0
  %143 = vmatprep.subr.bf16.mxu0 0
  %144 = vmatpush2.bf16.msra.mxu0 0
  %145 = vmatprep.subr.bf16.mxu0 0
  %146 = vmatpush2.bf16.msra.mxu0 0
  %147 = vmatprep.subr.bf16.mxu0 0
  %148 = vmatpush2.bf16.msra.mxu0 0
  %149 = vmatprep.subr.bf16.mxu0 0
  %150 = vmatpush2.bf16.msra.mxu0 0
  %151 = vmatprep.subr.bf16.mxu0 0
  %152 = vmatpush2.bf16.msra.mxu0 0
  %153 = vmatprep.mubr.bf16.mxu0 0
  %154 = vmatmul.mubr.bf16.gmra.mxu0 %v71
  %v155 = vpop.f32.mrf.mxu0
  %v156 = vadd.f32 0.0, %v155
  %v157 = vpop.f32.mrf.mxu0
  %v158 = vpop.f32.mrf.mxu0
  %v159 = vadd.f32 0.0, %v158
  %v160 = vpop.f32.mrf.mxu0
  %161 = vdwg.mxu0
  %v164 = vunpack.c.l.b16 %v17
  %v165 = vunpack.c.l.b16 %v18
  %v166 = vpack.c.b16 %v165, %v164
  %v184 = vunpack.c.l.b16 %v35
  %v185 = vunpack.c.l.b16 %v36
  %v186 = vunpack.c.l.b16 %v37
  %v187 = vunpack.c.l.b16 %v38
  %v188 = vunpack.c.l.b16 %v39
  %v189 = vunpack.c.l.b16 %v40
  %v190 = vunpack.c.l.b16 %v41
  %v191 = vunpack.c.l.b16 %v42
  %v192 = vunpack.c.l.b16 %v43
  %v193 = vunpack.c.l.b16 %v44
  %v194 = vunpack.c.l.b16 %v45
  %v195 = vunpack.c.l.b16 %v46
  %v196 = vunpack.c.l.b16 %v47
  %v197 = vunpack.c.l.b16 %v48
  %v198 = vunpack.c.l.b16 %v49
  %v199 = vunpack.c.l.b16 %v50
  %v200 = vpack.c.b16 %v185, %v184
  %v201 = vpack.c.b16 %v187, %v186
  %v202 = vpack.c.b16 %v189, %v188
  %v203 = vpack.c.b16 %v191, %v190
  %v204 = vpack.c.b16 %v193, %v192
  %v205 = vpack.c.b16 %v195, %v194
  %v206 = vpack.c.b16 %v197, %v196
  %v207 = vpack.c.b16 %v199, %v198
  %216 = vmatprep.subr.bf16.mxu0 0
  %217 = vmatpush1.bf16.msra.mxu0 %v207
  %218 = vmatprep.subr.bf16.mxu0 0
  %219 = vmatpush1.bf16.msra.mxu0 %v206
  %220 = vmatprep.subr.bf16.mxu0 0
  %221 = vmatpush1.bf16.msra.mxu0 %v205
  %222 = vmatprep.subr.bf16.mxu0 0
  %223 = vmatpush1.bf16.msra.mxu0 %v204
  %224 = vmatprep.subr.bf16.mxu0 0
  %225 = vmatpush1.bf16.msra.mxu0 %v203
  %226 = vmatprep.subr.bf16.mxu0 0
  %227 = vmatpush1.bf16.msra.mxu0 %v202
  %228 = vmatprep.subr.bf16.mxu0 0
  %229 = vmatpush1.bf16.msra.mxu0 %v201
  %230 = vmatprep.subr.bf16.mxu0 0
  %231 = vmatpush1.bf16.msra.mxu0 %v200
  %232 = vmatprep.subr.bf16.mxu0 0
  %233 = vmatpush2.bf16.msra.mxu0 0
  %234 = vmatprep.subr.bf16.mxu0 0
  %235 = vmatpush2.bf16.msra.mxu0 0
  %236 = vmatprep.subr.bf16.mxu0 0
  %237 = vmatpush2.bf16.msra.mxu0 0
  %238 = vmatprep.subr.bf16.mxu0 0
  %239 = vmatpush2.bf16.msra.mxu0 0
  %240 = vmatprep.subr.bf16.mxu0 0
  %241 = vmatpush2.bf16.msra.mxu0 0
  %242 = vmatprep.subr.bf16.mxu0 0
  %243 = vmatpush2.bf16.msra.mxu0 0
  %244 = vmatprep.subr.bf16.mxu0 0
  %245 = vmatpush2.bf16.msra.mxu0 0
  %246 = vmatprep.subr.bf16.mxu0 0
  %247 = vmatpush2.bf16.msra.mxu0 0
  %248 = vmatprep.mubr.bf16.mxu0 0
  %249 = vmatmul.mubr.bf16.gmra.mxu0 %v166
  %v250 = vpop.f32.mrf.mxu0
  %v251 = vadd.f32 0.0, %v250
  %v252 = vpop.f32.mrf.mxu0
  %v253 = vpop.f32.mrf.mxu0
  %v254 = vadd.f32 0.0, %v253
  %v255 = vpop.f32.mrf.mxu0
  %256 = vdwg.mxu0
  %v257 = vmul.f32 %v156, 0.17677669
  %v258 = vmul.f32 %v159, 0.17677669
  %v259 = vmul.f32 %v251, 0.17677669
  %v260 = vmul.f32 %v254, 0.17677669
  %vm261 = vcmask 1048064
  %262 = vrot.lane.b32.xlu0 %v257, 64
  %v263 = vpop.permute.xlu0 %262
  %v264 = vsel %vm261, %v263, %v257
  %265 = vrot.lane.b32.xlu0 %v258, 64
  %v266 = vpop.permute.xlu0 %265
  %v267 = vsel %vm261, %v266, %v258
  %268 = vrot.lane.b32.xlu0 %v259, 64
  %v269 = vpop.permute.xlu0 %268
  %v270 = vsel %vm261, %v269, %v259
  %271 = vrot.lane.b32.xlu0 %v260, 64
  %v272 = vpop.permute.xlu0 %271
  %v273 = vsel %vm261, %v272, %v260
  %274 = vrot.lane.b32.xlu0 %v264, 64
  %v275 = vpop.permute.xlu0 %274
  %276 = vrot.lane.b32.xlu0 %v267, 64
  %v277 = vpop.permute.xlu0 %276
  %278 = vrot.lane.b32.xlu0 %v270, 64
  %v279 = vpop.permute.xlu0 %278
  %280 = vrot.lane.b32.xlu0 %v273, 64
  %v281 = vpop.permute.xlu0 %280
  %v282 = vsel %vm261, %v275, %v257
  %v283 = vsel %vm261, %v277, %v258
  %v284 = vsel %vm261, %v279, %v259
  %v285 = vsel %vm261, %v281, %v260
  %290 = vrot.lane.b32.xlu0 %v282, 96
  %v291 = vpop.permute.xlu0 %290
  %292 = vrot.lane.b32.xlu0 %v283, 96
  %v293 = vpop.permute.xlu0 %292
  %294 = vrot.lane.b32.xlu0 %v284, 96
  %v295 = vpop.permute.xlu0 %294
  %296 = vrot.lane.b32.xlu0 %v285, 96
  %v297 = vpop.permute.xlu0 %296
  %v302 = vmax.f32 %v257, %v291
  %v303 = vmax.f32 %v258, %v293
  %v304 = vmax.f32 %v259, %v295
  %v305 = vmax.f32 %v260, %v297
  %306 = vrot.lane.b32.xlu0 %v302, 64
  %v307 = vpop.permute.xlu0 %306
  %v308 = vsel %vm261, %v307, %v302
  %309 = vrot.lane.b32.xlu0 %v303, 64
  %v310 = vpop.permute.xlu0 %309
  %v311 = vsel %vm261, %v310, %v303
  %312 = vrot.lane.b32.xlu0 %v304, 64
  %v313 = vpop.permute.xlu0 %312
  %v314 = vsel %vm261, %v313, %v304
  %315 = vrot.lane.b32.xlu0 %v305, 64
  %v316 = vpop.permute.xlu0 %315
  %v317 = vsel %vm261, %v316, %v305
  %318 = vrot.lane.b32.xlu0 %v308, 64
  %v319 = vpop.permute.xlu0 %318
  %320 = vrot.lane.b32.xlu0 %v311, 64
  %v321 = vpop.permute.xlu0 %320
  %322 = vrot.lane.b32.xlu0 %v314, 64
  %v323 = vpop.permute.xlu0 %322
  %324 = vrot.lane.b32.xlu0 %v317, 64
  %v325 = vpop.permute.xlu0 %324
  %v326 = vsel %vm261, %v319, %v302
  %v327 = vsel %vm261, %v321, %v303
  %v328 = vsel %vm261, %v323, %v304
  %v329 = vsel %vm261, %v325, %v305
  %334 = vrot.lane.b32.xlu0 %v326, 80
  %v335 = vpop.permute.xlu0 %334
  %336 = vrot.lane.b32.xlu0 %v327, 80
  %v337 = vpop.permute.xlu0 %336
  %338 = vrot.lane.b32.xlu0 %v328, 80
  %v339 = vpop.permute.xlu0 %338
  %340 = vrot.lane.b32.xlu0 %v329, 80
  %v341 = vpop.permute.xlu0 %340
  %v346 = vmax.f32 %v302, %v335
  %v347 = vmax.f32 %v303, %v337
  %v348 = vmax.f32 %v304, %v339
  %v349 = vmax.f32 %v305, %v341
  %350 = vrot.lane.b32.xlu0 %v346, 64
  %v351 = vpop.permute.xlu0 %350
  %v352 = vsel %vm261, %v351, %v346
  %353 = vrot.lane.b32.xlu0 %v347, 64
  %v354 = vpop.permute.xlu0 %353
  %v355 = vsel %vm261, %v354, %v347
  %356 = vrot.lane.b32.xlu0 %v348, 64
  %v357 = vpop.permute.xlu0 %356
  %v358 = vsel %vm261, %v357, %v348
  %359 = vrot.lane.b32.xlu0 %v349, 64
  %v360 = vpop.permute.xlu0 %359
  %v361 = vsel %vm261, %v360, %v349
  %362 = vrot.lane.b32.xlu0 %v352, 64
  %v363 = vpop.permute.xlu0 %362
  %364 = vrot.lane.b32.xlu0 %v355, 64
  %v365 = vpop.permute.xlu0 %364
  %366 = vrot.lane.b32.xlu0 %v358, 64
  %v367 = vpop.permute.xlu0 %366
  %368 = vrot.lane.b32.xlu0 %v361, 64
  %v369 = vpop.permute.xlu0 %368
  %v370 = vsel %vm261, %v363, %v346
  %v371 = vsel %vm261, %v365, %v347
  %v372 = vsel %vm261, %v367, %v348
  %v373 = vsel %vm261, %v369, %v349
  %378 = vrot.lane.b32.xlu0 %v370, 72
  %v379 = vpop.permute.xlu0 %378
  %380 = vrot.lane.b32.xlu0 %v371, 72
  %v381 = vpop.permute.xlu0 %380
  %382 = vrot.lane.b32.xlu0 %v372, 72
  %v383 = vpop.permute.xlu0 %382
  %384 = vrot.lane.b32.xlu0 %v373, 72
  %v385 = vpop.permute.xlu0 %384
  %v390 = vmax.f32 %v346, %v379
  %v391 = vmax.f32 %v347, %v381
  %v392 = vmax.f32 %v348, %v383
  %v393 = vmax.f32 %v349, %v385
  %394 = vrot.lane.b32.xlu0 %v390, 64
  %v395 = vpop.permute.xlu0 %394
  %v396 = vsel %vm261, %v395, %v390
  %397 = vrot.lane.b32.xlu0 %v391, 64
  %v398 = vpop.permute.xlu0 %397
  %v399 = vsel %vm261, %v398, %v391
  %400 = vrot.lane.b32.xlu0 %v392, 64
  %v401 = vpop.permute.xlu0 %400
  %v402 = vsel %vm261, %v401, %v392
  %403 = vrot.lane.b32.xlu0 %v393, 64
  %v404 = vpop.permute.xlu0 %403
  %v405 = vsel %vm261, %v404, %v393
  %406 = vrot.lane.b32.xlu0 %v396, 64
  %v407 = vpop.permute.xlu0 %406
  %408 = vrot.lane.b32.xlu0 %v399, 64
  %v409 = vpop.permute.xlu0 %408
  %410 = vrot.lane.b32.xlu0 %v402, 64
  %v411 = vpop.permute.xlu0 %410
  %412 = vrot.lane.b32.xlu0 %v405, 64
  %v413 = vpop.permute.xlu0 %412
  %v414 = vsel %vm261, %v407, %v390
  %v415 = vsel %vm261, %v409, %v391
  %v416 = vsel %vm261, %v411, %v392
  %v417 = vsel %vm261, %v413, %v393
  %422 = vrot.lane.b32.xlu0 %v414, 68
  %v423 = vpop.permute.xlu0 %422
  %424 = vrot.lane.b32.xlu0 %v415, 68
  %v425 = vpop.permute.xlu0 %424
  %426 = vrot.lane.b32.xlu0 %v416, 68
  %v427 = vpop.permute.xlu0 %426
  %428 = vrot.lane.b32.xlu0 %v417, 68
  %v429 = vpop.permute.xlu0 %428
  %v434 = vmax.f32 %v390, %v423
  %v435 = vmax.f32 %v391, %v425
  %v436 = vmax.f32 %v392, %v427
  %v437 = vmax.f32 %v393, %v429
  %v438 = vsub.f32 %v257, %v434
  %v439 = vsub.f32 %v258, %v435
  %v440 = vsub.f32 %v259, %v436
  %v441 = vsub.f32 %v260, %v437
  %v442 = vmul.f32 %v438, 1.442695
  %v443 = vpow.pop %v442
  %v444 = vmul.f32 %v439, 1.442695
  %v445 = vpow.pop %v444
  %v446 = vmul.f32 %v440, 1.442695
  %v447 = vpow.pop %v446
  %v448 = vmul.f32 %v441, 1.442695
  %v449 = vpow.pop %v448
  %450 = vrot.lane.b32.xlu0 %v443, 64
  %v451 = vpop.permute.xlu0 %450
  %v452 = vsel %vm261, %v451, %v443
  %453 = vrot.lane.b32.xlu0 %v445, 64
  %v454 = vpop.permute.xlu0 %453
  %v455 = vsel %vm261, %v454, %v445
  %456 = vrot.lane.b32.xlu0 %v447, 64
  %v457 = vpop.permute.xlu0 %456
  %v458 = vsel %vm261, %v457, %v447
  %459 = vrot.lane.b32.xlu0 %v449, 64
  %v460 = vpop.permute.xlu0 %459
  %v461 = vsel %vm261, %v460, %v449
  %462 = vrot.lane.b32.xlu0 %v452, 64
  %v463 = vpop.permute.xlu0 %462
  %464 = vrot.lane.b32.xlu0 %v455, 64
  %v465 = vpop.permute.xlu0 %464
  %466 = vrot.lane.b32.xlu0 %v458, 64
  %v467 = vpop.permute.xlu0 %466
  %468 = vrot.lane.b32.xlu0 %v461, 64
  %v469 = vpop.permute.xlu0 %468
  %v470 = vsel %vm261, %v463, %v443
  %v471 = vsel %vm261, %v465, %v445
  %v472 = vsel %vm261, %v467, %v447
  %v473 = vsel %vm261, %v469, %v449
  %478 = vrot.lane.b32.xlu0 %v470, 96
  %v479 = vpop.permute.xlu0 %478
  %480 = vrot.lane.b32.xlu0 %v471, 96
  %v481 = vpop.permute.xlu0 %480
  %482 = vrot.lane.b32.xlu0 %v472, 96
  %v483 = vpop.permute.xlu0 %482
  %484 = vrot.lane.b32.xlu0 %v473, 96
  %v485 = vpop.permute.xlu0 %484
  %v490 = vadd.f32 %v443, %v479
  %v491 = vadd.f32 %v445, %v481
  %v492 = vadd.f32 %v447, %v483
  %v493 = vadd.f32 %v449, %v485
  %494 = vrot.lane.b32.xlu0 %v490, 64
  %v495 = vpop.permute.xlu0 %494
  %v496 = vsel %vm261, %v495, %v490
  %497 = vrot.lane.b32.xlu0 %v491, 64
  %v498 = vpop.permute.xlu0 %497
  %v499 = vsel %vm261, %v498, %v491
  %500 = vrot.lane.b32.xlu0 %v492, 64
  %v501 = vpop.permute.xlu0 %500
  %v502 = vsel %vm261, %v501, %v492
  %503 = vrot.lane.b32.xlu0 %v493, 64
  %v504 = vpop.permute.xlu0 %503
  %v505 = vsel %vm261, %v504, %v493
  %506 = vrot.lane.b32.xlu0 %v496, 64
  %v507 = vpop.permute.xlu0 %506
  %508 = vrot.lane.b32.xlu0 %v499, 64
  %v509 = vpop.permute.xlu0 %508
  %510 = vrot.lane.b32.xlu0 %v502, 64
  %v511 = vpop.permute.xlu0 %510
  %512 = vrot.lane.b32.xlu0 %v505, 64
  %v513 = vpop.permute.xlu0 %512
  %v514 = vsel %vm261, %v507, %v490
  %v515 = vsel %vm261, %v509, %v491
  %v516 = vsel %vm261, %v511, %v492
  %v517 = vsel %vm261, %v513, %v493
  %522 = vrot.lane.b32.xlu0 %v514, 80
  %v523 = vpop.permute.xlu0 %522
  %524 = vrot.lane.b32.xlu0 %v515, 80
  %v525 = vpop.permute.xlu0 %524
  %526 = vrot.lane.b32.xlu0 %v516, 80
  %v527 = vpop.permute.xlu0 %526
  %528 = vrot.lane.b32.xlu0 %v517, 80
  %v529 = vpop.permute.xlu0 %528
  %v534 = vadd.f32 %v490, %v523
  %v535 = vadd.f32 %v491, %v525
  %v536 = vadd.f32 %v492, %v527
  %v537 = vadd.f32 %v493, %v529
  %538 = vrot.lane.b32.xlu0 %v534, 64
  %v539 = vpop.permute.xlu0 %538
  %v540 = vsel %vm261, %v539, %v534
  %541 = vrot.lane.b32.xlu0 %v535, 64
  %v542 = vpop.permute.xlu0 %541
  %v543 = vsel %vm261, %v542, %v535
  %544 = vrot.lane.b32.xlu0 %v536, 64
  %v545 = vpop.permute.xlu0 %544
  %v546 = vsel %vm261, %v545, %v536
  %547 = vrot.lane.b32.xlu0 %v537, 64
  %v548 = vpop.permute.xlu0 %547
  %v549 = vsel %vm261, %v548, %v537
  %550 = vrot.lane.b32.xlu0 %v540, 64
  %v551 = vpop.permute.xlu0 %550
  %552 = vrot.lane.b32.xlu0 %v543, 64
  %v553 = vpop.permute.xlu0 %552
  %554 = vrot.lane.b32.xlu0 %v546, 64
  %v555 = vpop.permute.xlu0 %554
  %556 = vrot.lane.b32.xlu0 %v549, 64
  %v557 = vpop.permute.xlu0 %556
  %v558 = vsel %vm261, %v551, %v534
  %v559 = vsel %vm261, %v553, %v535
  %v560 = vsel %vm261, %v555, %v536
  %v561 = vsel %vm261, %v557, %v537
  %566 = vrot.lane.b32.xlu0 %v558, 72
  %v567 = vpop.permute.xlu0 %566
  %568 = vrot.lane.b32.xlu0 %v559, 72
  %v569 = vpop.permute.xlu0 %568
  %570 = vrot.lane.b32.xlu0 %v560, 72
  %v571 = vpop.permute.xlu0 %570
  %572 = vrot.lane.b32.xlu0 %v561, 72
  %v573 = vpop.permute.xlu0 %572
  %v578 = vadd.f32 %v534, %v567
  %v579 = vadd.f32 %v535, %v569
  %v580 = vadd.f32 %v536, %v571
  %v581 = vadd.f32 %v537, %v573
  %582 = vrot.lane.b32.xlu0 %v578, 64
  %v583 = vpop.permute.xlu0 %582
  %v584 = vsel %vm261, %v583, %v578
  %585 = vrot.lane.b32.xlu0 %v579, 64
  %v586 = vpop.permute.xlu0 %585
  %v587 = vsel %vm261, %v586, %v579
  %588 = vrot.lane.b32.xlu0 %v580, 64
  %v589 = vpop.permute.xlu0 %588
  %v590 = vsel %vm261, %v589, %v580
  %591 = vrot.lane.b32.xlu0 %v581, 64
  %v592 = vpop.permute.xlu0 %591
  %v593 = vsel %vm261, %v592, %v581
  %594 = vrot.lane.b32.xlu0 %v584, 64
  %v595 = vpop.permute.xlu0 %594
  %596 = vrot.lane.b32.xlu0 %v587, 64
  %v597 = vpop.permute.xlu0 %596
  %598 = vrot.lane.b32.xlu0 %v590, 64
  %v599 = vpop.permute.xlu0 %598
  %600 = vrot.lane.b32.xlu0 %v593, 64
  %v601 = vpop.permute.xlu0 %600
  %v602 = vsel %vm261, %v595, %v578
  %v603 = vsel %vm261, %v597, %v579
  %v604 = vsel %vm261, %v599, %v580
  %v605 = vsel %vm261, %v601, %v581
  %610 = vrot.lane.b32.xlu0 %v602, 68
  %v611 = vpop.permute.xlu0 %610
  %612 = vrot.lane.b32.xlu0 %v603, 68
  %v613 = vpop.permute.xlu0 %612
  %614 = vrot.lane.b32.xlu0 %v604, 68
  %v615 = vpop.permute.xlu0 %614
  %616 = vrot.lane.b32.xlu0 %v605, 68
  %v617 = vpop.permute.xlu0 %616
  %v622 = vadd.f32 %v578, %v611
  %v623 = vadd.f32 %v579, %v613
  %v624 = vadd.f32 %v580, %v615
  %v625 = vadd.f32 %v581, %v617
  %v626 = vrcp.pop %v622
  %v627 = vrcp.pop %v623
  %v628 = vrcp.pop %v624
  %v629 = vrcp.pop %v625
  %v630 = vmul.f32 %v443, %v626
  %v631 = vmul.f32 %v445, %v627
  %v632 = vmul.f32 %v447, %v628
  %v633 = vmul.f32 %v449, %v629
  %v634 = vpack.c.bf16 %v631, %v630
  %v635 = vpack.c.bf16 %v633, %v632
  %v644 = vunpack.c.l.b16 %v51
  %v645 = vunpack.c.l.b16 %v52
  %v646 = vunpack.c.l.b16 %v53
  %v647 = vunpack.c.l.b16 %v54
  %v648 = vunpack.c.l.b16 %v55
  %v649 = vunpack.c.l.b16 %v56
  %v650 = vunpack.c.l.b16 %v57
  %v651 = vunpack.c.l.b16 %v58
  %v652 = vpack.c.b16 %v645, %v644
  %v653 = vpack.c.b16 %v647, %v646
  %v654 = vpack.c.b16 %v649, %v648
  %v655 = vpack.c.b16 %v651, %v650
  %vm660 = vcmask 523264
  %v662 = vsel %vm660, %v634, 0
  %664 = vmatprep.subr.bf16.mxu0 0
  %665 = vmatpush1.bf16.msra.mxu0 0
  %666 = vmatprep.subr.bf16.mxu0 0
  %667 = vmatpush1.bf16.msra.mxu0 0
  %668 = vmatprep.subr.bf16.mxu0 0
  %669 = vmatpush1.bf16.msra.mxu0 0
  %670 = vmatprep.subr.bf16.mxu0 0
  %671 = vmatpush1.bf16.msra.mxu0 0
  %672 = vmatprep.subr.bf16.mxu0 0
  %673 = vmatpush1.bf16.msra.mxu0 %v655
  %674 = vmatprep.subr.bf16.mxu0 0
  %675 = vmatpush1.bf16.msra.mxu0 %v654
  %676 = vmatprep.subr.bf16.mxu0 0
  %677 = vmatpush1.bf16.msra.mxu0 %v653
  %678 = vmatprep.subr.bf16.mxu0 0
  %679 = vmatpush1.bf16.msra.mxu0 %v652
  %680 = vmatprep.subr.bf16.mxu0 0
  %681 = vmatpush2.bf16.msra.mxu0 0
  %682 = vmatprep.subr.bf16.mxu0 0
  %683 = vmatpush2.bf16.msra.mxu0 0
  %684 = vmatprep.subr.bf16.mxu0 0
  %685 = vmatpush2.bf16.msra.mxu0 0
  %686 = vmatprep.subr.bf16.mxu0 0
  %687 = vmatpush2.bf16.msra.mxu0 0
  %688 = vmatprep.subr.bf16.mxu0 0
  %689 = vmatpush2.bf16.msra.mxu0 0
  %690 = vmatprep.subr.bf16.mxu0 0
  %691 = vmatpush2.bf16.msra.mxu0 0
  %692 = vmatprep.subr.bf16.mxu0 0
  %693 = vmatpush2.bf16.msra.mxu0 0
  %694 = vmatprep.subr.bf16.mxu0 0
  %695 = vmatpush2.bf16.msra.mxu0 0
  %696 = vmatprep.mubr.bf16.mxu0 0
  %697 = vmatmul.mubr.bf16.gmra.mxu0 %v662
  %v698 = vpop.f32.mrf.mxu0
  %v699 = vadd.f32 0.0, %v698
  %v700 = vpop.f32.mrf.mxu0
  %v701 = vpop.f32.mrf.mxu0
  %v702 = vadd.f32 0.0, %v701
  %v703 = vpop.f32.mrf.mxu0
  %704 = vdwg.mxu0
  %v713 = vunpack.c.l.b16 %v59
  %v714 = vunpack.c.l.b16 %v60
  %v715 = vunpack.c.l.b16 %v61
  %v716 = vunpack.c.l.b16 %v62
  %v717 = vunpack.c.l.b16 %v63
  %v718 = vunpack.c.l.b16 %v64
  %v719 = vunpack.c.l.b16 %v65
  %v720 = vunpack.c.l.b16 %v66
  %v721 = vpack.c.b16 %v714, %v713
  %v722 = vpack.c.b16 %v716, %v715
  %v723 = vpack.c.b16 %v718, %v717
  %v724 = vpack.c.b16 %v720, %v719
  %v730 = vsel %vm660, %v635, 0
  %732 = vmatprep.subr.bf16.mxu0 0
  %733 = vmatpush1.bf16.msra.mxu0 0
  %734 = vmatprep.subr.bf16.mxu0 0
  %735 = vmatpush1.bf16.msra.mxu0 0
  %736 = vmatprep.subr.bf16.mxu0 0
  %737 = vmatpush1.bf16.msra.mxu0 0
  %738 = vmatprep.subr.bf16.mxu0 0
  %739 = vmatpush1.bf16.msra.mxu0 0
  %740 = vmatprep.subr.bf16.mxu0 0
  %741 = vmatpush1.bf16.msra.mxu0 %v724
  %742 = vmatprep.subr.bf16.mxu0 0
  %743 = vmatpush1.bf16.msra.mxu0 %v723
  %744 = vmatprep.subr.bf16.mxu0 0
  %745 = vmatpush1.bf16.msra.mxu0 %v722
  %746 = vmatprep.subr.bf16.mxu0 0
  %747 = vmatpush1.bf16.msra.mxu0 %v721
  %748 = vmatprep.subr.bf16.mxu0 0
  %749 = vmatpush2.bf16.msra.mxu0 0
  %750 = vmatprep.subr.bf16.mxu0 0
  %751 = vmatpush2.bf16.msra.mxu0 0
  %752 = vmatprep.subr.bf16.mxu0 0
  %753 = vmatpush2.bf16.msra.mxu0 0
  %754 = vmatprep.subr.bf16.mxu0 0
  %755 = vmatpush2.bf16.msra.mxu0 0
  %756 = vmatprep.subr.bf16.mxu0 0
  %757 = vmatpush2.bf16.msra.mxu0 0
  %758 = vmatprep.subr.bf16.mxu0 0
  %759 = vmatpush2.bf16.msra.mxu0 0
  %760 = vmatprep.subr.bf16.mxu0 0
  %761 = vmatpush2.bf16.msra.mxu0 0
  %762 = vmatprep.subr.bf16.mxu0 0
  %763 = vmatpush2.bf16.msra.mxu0 0
  %764 = vmatprep.mubr.bf16.mxu0 0
  %765 = vmatmul.mubr.bf16.gmra.mxu0 %v730
  %v766 = vpop.f32.mrf.mxu0
  %v767 = vadd.f32 0.0, %v766
  %v768 = vpop.f32.mrf.mxu0
  %v769 = vpop.f32.mrf.mxu0
  %v770 = vadd.f32 0.0, %v769
  %v771 = vpop.f32.mrf.mxu0
  %772 = vdwg.mxu0
  %773 = vst [vmem:[%s3] sm:$0xff] %v699
  %774 = vst [vmem:[%s3 + $0x8] sm:$0xff] %v702
  %775 = vst [vmem:[%s3 + $0x10] sm:$0xff] %v767
  %776 = vst [vmem:[%s3 + $0x18] sm:$0xff] %v770
  // Predicated region
  $region14: #{scale_dot_product.1} parent=0 // pred_check
    _
  $region15: #{scale_dot_product.1} parent=0 // pred_check_branch
    %778 = sbr.rel (0) target = $region17
  $region16: #{scale_dot_product.1} parent=0 // pred_region
    _
  $region17: #{scale_dot_product.1} parent=0 // pred_fallthru
    _
  // Predicated region
  $region18: #{scale_dot_product.1} parent=0 // pred_check
    _
  $region19: #{scale_dot_product.1} parent=0 // pred_check_branch
    %780 = sbr.rel (0) target = $region21
  $region20: #{scale_dot_product.1} parent=0 // pred_region
    _
  $region21: #{scale_dot_product.1} parent=0 // pred_fallthru
    _

</llo_original>
